<compile_context>
chip_gen: v7x
topology: tpu7x:2x2x1
jax: 0.10.0
libtpu: 0.0.40
codegen_flags: <defaults>
</compile_context>

<pallas_src>
import jax
import jax.numpy as jnp
from jax.experimental import pallas as pl
from jax.experimental.pallas import tpu as pltpu

N_CLASSES = 10
N_FEATURES = 20


def logreg_kernel(x_ref, w_ref, b_ref, o_ref):
    x = x_ref[...].astype(jnp.float32)          # (TILE_N, F)
    w = w_ref[...].astype(jnp.float32)          # (F, C)
    b = b_ref[...].astype(jnp.float32)          # (1, C)
    # logits = x @ W + b  (MXU, f32 accumulation)
    logits = jnp.dot(x, w, preferred_element_type=jnp.float32) + b   # (TILE_N, C)
    # numerically stable log_softmax along classes
    m = jnp.max(logits, axis=-1, keepdims=True)
    shifted = logits - m
    lse = jnp.log(jnp.sum(jnp.exp(shifted), axis=-1, keepdims=True))
    o_ref[...] = (shifted - lse).astype(o_ref.dtype)


def logreg_forward(x, w, b, *, tile_n=1024):
    """x: (N, F) f32/bf16, w: (F, C), b: (C,) -> log-probs (N, C) f32.

    Matches PyTorch LogReg.forward: log_softmax(Linear(x), dim=1), with the
    weight stored as (F, C) so logits = x @ W + b == x @ W_torch.T + b.
    """
    n, f = x.shape
    c = w.shape[1]
    b2 = b.reshape(1, c).astype(jnp.float32)

    # Tile over batch: multiple of 8 when tiling, or the full batch if it is
    # smaller than one tile (block dim == full array dim is always legal).
    tile = min(tile_n, n)
    if tile < n:
        tile = (tile // 8) * 8 or 8
    grid_n = pl.cdiv(n, tile)

    return pl.pallas_call(
        logreg_kernel,
        out_shape=jax.ShapeDtypeStruct((n, c), jnp.float32),
        grid_spec=pltpu.PrefetchScalarGridSpec(
            num_scalar_prefetch=0,
            grid=(grid_n,),
            in_specs=[
                pl.BlockSpec((tile, f), lambda i: (i, 0)),   # x: tiled over batch
                pl.BlockSpec((f, c), lambda i: (0, 0)),      # W: resident
                pl.BlockSpec((1, c), lambda i: (0, 0)),      # b: resident
            ],
            out_specs=pl.BlockSpec((tile, c), lambda i: (i, 0)),
        ),
        compiler_params=pltpu.CompilerParams(
            dimension_semantics=("parallel",)),
    )(x, w, b2)


if __name__ == "__main__":
    key = jax.random.PRNGKey(0)
    kx, kw, kb = jax.random.split(key, 3)

    # Deterministic parameter init (mimics nn.Linear uniform(-1/sqrt(F), 1/sqrt(F)))
    bound = 1.0 / (N_FEATURES ** 0.5)
    w = jax.random.uniform(kw, (N_FEATURES, N_CLASSES), dtype=jnp.float32,
                           minval=-bound, maxval=bound)
    b = jax.random.uniform(kb, (N_CLASSES,), dtype=jnp.float32,
                           minval=-bound, maxval=bound)

    # --- 1) Small f32 batch (single tile), exact check vs pure-JAX reference ---
    batch = 8
    x = jax.random.normal(kx, (batch, N_FEATURES), dtype=jnp.float32)
    out = jax.block_until_ready(logreg_forward(x, w, b))
    ref = jax.nn.log_softmax(x @ w + b, axis=1)
    assert out.shape == (batch, N_CLASSES)
    assert jnp.allclose(out, ref, atol=1e-5), "f32 mismatch vs reference"

    # --- 2) Multi-tile bf16-input path (batch tiled over the grid, f32 accumulate) ---
    batch2, tile2 = 256, 128
    x2 = jax.random.normal(kx, (batch2, N_FEATURES), dtype=jnp.float32
                           ).astype(jnp.bfloat16)
    out2 = jax.block_until_ready(logreg_forward(x2, w, b, tile_n=tile2))
    ref2 = jax.nn.log_softmax(x2.astype(jnp.float32) @ w + b, axis=1)
    assert out2.shape == (batch2, N_CLASSES)
    assert jnp.allclose(out2, ref2, atol=1e-5), "bf16-input mismatch vs reference"

    print("KERNEL_OK")
</pallas_src>

<mosaic_0001>
module attributes {stable_mosaic.version = 11 : i64} {
  func.func @logreg_kernel(%arg0: i32, %arg1: memref<8x20xf32, #tpu.memory_space<vmem>>, %arg2: memref<20x10xf32, #tpu.memory_space<vmem>>, %arg3: memref<1x10xf32, #tpu.memory_space<vmem>>, %arg4: memref<8x10xf32, #tpu.memory_space<vmem>>) attributes {dimension_semantics = [#tpu.dimension_semantics<parallel>], iteration_bounds = array<i64: 1>, scalar_prefetch = 0 : i64, scratch_operands = 0 : i64, tpu.core_type = #tpu.core_type<tc>, window_params = [{transform_indices = @transform_0, window_bounds = array<i64: 8, 20>}, {pipeline_mode = #tpu.pipeline_mode<synchronous>, transform_indices = @transform_1, window_bounds = array<i64: 20, 10>}, {pipeline_mode = #tpu.pipeline_mode<synchronous>, transform_indices = @transform_2, window_bounds = array<i64: 1, 10>}, {transform_indices = @transform_3, window_bounds = array<i64: 8, 10>}]} {
    %c0 = arith.constant 0 : index
    %c0_0 = arith.constant 0 : index
    %0 = vector.load %arg1[%c0, %c0_0] : memref<8x20xf32, #tpu.memory_space<vmem>>, vector<8x20xf32>
    %c0_1 = arith.constant 0 : index
    %c0_2 = arith.constant 0 : index
    %1 = vector.load %arg2[%c0_1, %c0_2] : memref<20x10xf32, #tpu.memory_space<vmem>>, vector<20x10xf32>
    %c0_3 = arith.constant 0 : index
    %c0_4 = arith.constant 0 : index
    %2 = vector.load %arg3[%c0_3, %c0_4] : memref<1x10xf32, #tpu.memory_space<vmem>>, vector<1x10xf32>
    %cst = arith.constant dense<0.000000e+00> : vector<8x10xf32>
    %3 = tpu.matmul %0, %1, %cst {dimension_numbers = #tpu.dot_dimension_numbers<[1], [0], [0], [1], [0, 0, 1, 1], [], []>} : vector<8x20xf32>, vector<20x10xf32>, vector<8x10xf32> -> vector<8x10xf32>
    %4 = vector.broadcast %2 : vector<1x10xf32> to vector<8x10xf32>
    %5 = arith.addf %3, %4 : vector<8x10xf32>
    %cst_5 = arith.constant dense<0xFF800000> : vector<8xf32>
    %6 = vector.multi_reduction <maximumf>, %5, %cst_5 [1] : vector<8x10xf32> to vector<8xf32>
    %7 = vector.shape_cast %6 : vector<8xf32> to vector<8x1xf32>
    %8 = vector.broadcast %7 : vector<8x1xf32> to vector<8x10xf32>
    %9 = arith.subf %5, %8 : vector<8x10xf32>
    %10 = math.exp %9 : vector<8x10xf32>
    %cst_6 = arith.constant dense<0.000000e+00> : vector<8xf32>
    %11 = vector.multi_reduction <add>, %10, %cst_6 [1] : vector<8x10xf32> to vector<8xf32>
    %12 = vector.shape_cast %11 : vector<8xf32> to vector<8x1xf32>
    %13 = math.log %12 : vector<8x1xf32>
    %14 = vector.broadcast %13 : vector<8x1xf32> to vector<8x10xf32>
    %15 = arith.subf %9, %14 : vector<8x10xf32>
    %c0_7 = arith.constant 0 : index
    %c0_8 = arith.constant 0 : index
    %16 = vector.load %arg4[%c0_7, %c0_8] : memref<8x10xf32, #tpu.memory_space<vmem>>, vector<8x10xf32>
    tpu.vector_store %arg4[%c0_7, %c0_8], %15 {strides = array<i32>} : memref<8x10xf32, #tpu.memory_space<vmem>>, vector<8x10xf32>,
    return
  }
  func.func @transform_0(%arg0: i32) -> (i32, i32) {
    %c0_i32 = arith.constant 0 : i32
    %c0_i32_0 = arith.constant 0 : i32
    return %arg0, %c0_i32 : i32, i32
  }
  func.func @transform_1(%arg0: i32) -> (i32, i32) {
    %c0_i32 = arith.constant 0 : i32
    %c0_i32_0 = arith.constant 0 : i32
    %c0_i32_1 = arith.constant 0 : i32
    return %c0_i32, %c0_i32_0 : i32, i32
  }
  func.func @transform_2(%arg0: i32) -> (i32, i32) {
    %c0_i32 = arith.constant 0 : i32
    %c0_i32_0 = arith.constant 0 : i32
    %c0_i32_1 = arith.constant 0 : i32
    return %c0_i32, %c0_i32_0 : i32, i32
  }
  func.func @transform_3(%arg0: i32) -> (i32, i32) {
    %c0_i32 = arith.constant 0 : i32
    %c0_i32_0 = arith.constant 0 : i32
    return %arg0, %c0_i32 : i32, i32
  }
}

</mosaic_0001>

<llo_original>
// kernel: tpu_custom_call.1
$region0: #{tpu_custom_call.1}
  #allocation0 [shape = 'u32[]', space=smem, size = 0x4, offset = 0x4, fixed_abs, tag = 'smem constant byte address 0x4 - core index']
  #allocation1 [shape = 'u32[144,128]{1,0:T(1,128)}', space=vmem, size = 0x12000, scoped, tag = 'internal scratch']
  %s0 = inlined_call_operand.vmem [shape: f32[8,20], index: 0, kind: input, shape index: {}]
  %s1 = inlined_call_operand.vmem [shape: f32[20,10], index: 1, kind: input, shape index: {}]
  %s2 = inlined_call_operand.vmem [shape: f32[1,10], index: 2, kind: input, shape index: {}]
  %s3 = inlined_call_operand.hbm [shape: f32[8,10], index: 3, kind: output, shape index: {}]
  %s4 = sld [smem:[#allocation0]]
  $region22: #{tpu_custom_call.1} parent=0
    _
  %s6 = ssub.s32 1, %s4
  %s7 = scalar_select 0, %s6, %s4
  $region1: #{tpu_custom_call.1} parent=0
    #allocation2 [shape = 'u8[4096]{0}', space=vmem, size = 0x1000, scoped, tag = 'output window, operand 0, single buffered']
    #allocation3 [shape = 's32[1]{0}', space=sflag, size = 0x4, scoped, tag = 'scoped memory for tpu_custom_call.1']
    %8 = vsyncpa [#allocation3], 0
    // Predicated region
    $region2: #{tpu_custom_call.1} parent=1 // pred_check
      _
    $region3: #{tpu_custom_call.1} parent=1 // pred_check_branch
      %10 = sbr.rel (0) target = $region5
    $region4: #{tpu_custom_call.1} parent=1 // pred_region
      _
    $region5: #{tpu_custom_call.1} parent=1 // pred_fallthru
      _
    // Predicated region
    $region6: #{tpu_custom_call.1} parent=1 // pred_check
      _
    $region7: #{tpu_custom_call.1} parent=1 // pred_check_branch
      %12 = sbr.rel (0) target = $region9
    $region8: #{tpu_custom_call.1} parent=1 // pred_region
      _
    $region9: #{tpu_custom_call.1} parent=1 // pred_fallthru
      _
    // Predicated region
    $region10: #{tpu_custom_call.1} parent=1 // pred_check
      _
    $region11: #{tpu_custom_call.1} parent=1 // pred_check_branch
      %14 = sbr.rel (0) target = $region13
    $region12: #{tpu_custom_call.1} parent=1 // pred_region
      _
    $region13: #{tpu_custom_call.1} parent=1 // pred_fallthru
      _
    %v15 = vld [vmem:[%s0] sm:$0xff]
    %v16 = vld [vmem:[%s1] sm:$0xff]
    %v17 = vld [vmem:[%s1 + $0x8] sm:$0xff]
    %v18 = vld [vmem:[%s1 + $0x10] sm:$0xf]
    %v19 = vld [vmem:[%s2] sm:$0x1]
    %v21 = vlaneseq
    %v22 = vshrl.u32 %v21, 7
    %v23 = vsub.s32 0, %v22
    %v24 = vrot.slane %v19, %v23
    %vm26 = vcmask 162816
    %v28 = vsel %vm26, %v15, 0
    %vm30 = vcmask 1043456
    %v32 = vsel %vm30, %v18, 0
    %34 = vmatprep.subr.mxu0 0.0
    %35 = vmatpush1.msra.mxu0 %v16
    %36 = vmatprep.subr.mxu0 0.0
    %37 = vmatpush1.msra.mxu0 %v17
    %38 = vmatprep.subr.mxu0 0.0
    %39 = vmatpush1.msra.mxu0 %v32
    %40 = vmatprep.subr.mxu0 0.0
    %41 = vmatpush1.msra.mxu0 0.0
    %42 = vmatprep.subr.mxu0 0.0
    %43 = vmatpush1.msra.mxu0 0.0
    %44 = vmatprep.subr.mxu0 0.0
    %45 = vmatpush1.msra.mxu0 0.0
    %46 = vmatprep.subr.mxu0 0.0
    %47 = vmatpush1.msra.mxu0 0.0
    %48 = vmatprep.subr.mxu0 0.0
    %49 = vmatpush1.msra.mxu0 0.0
    %50 = vmatprep.subr.mxu0 0.0
    %51 = vmatpush1.msra.mxu0 0.0
    %52 = vmatprep.subr.mxu0 0.0
    %53 = vmatpush1.msra.mxu0 0.0
    %54 = vmatprep.subr.mxu0 0.0
    %55 = vmatpush1.msra.mxu0 0.0
    %56 = vmatprep.subr.mxu0 0.0
    %57 = vmatpush1.msra.mxu0 0.0
    %58 = vmatprep.subr.mxu0 0.0
    %59 = vmatpush1.msra.mxu0 0.0
    %60 = vmatprep.subr.mxu0 0.0
    %61 = vmatpush1.msra.mxu0 0.0
    %62 = vmatprep.subr.mxu0 0.0
    %63 = vmatpush1.msra.mxu0 0.0
    %64 = vmatprep.subr.mxu0 0.0
    %65 = vmatpush1.msra.mxu0 0.0
    %66 = vmatprep.subr.mxu0 0.0
    %67 = vmatpush1.msra.mxu0 0.0
    %68 = vmatprep.subr.mxu0 0.0
    %69 = vmatpush1.msra.mxu0 0.0
    %70 = vmatprep.subr.mxu0 0.0
    %71 = vmatpush1.msra.mxu0 0.0
    %72 = vmatprep.subr.mxu0 0.0
    %73 = vmatpush1.msra.mxu0 0.0
    %74 = vmatprep.subr.mxu0 0.0
    %75 = vmatpush1.msra.mxu0 0.0
    %76 = vmatprep.subr.mxu0 0.0
    %77 = vmatpush1.msra.mxu0 0.0
    %78 = vmatprep.subr.mxu0 0.0
    %79 = vmatpush1.msra.mxu0 0.0
    %80 = vmatprep.subr.mxu0 0.0
    %81 = vmatpush1.msra.mxu0 0.0
    %82 = vmatprep.subr.mxu0 0.0
    %83 = vmatpush1.msra.mxu0 0.0
    %84 = vmatprep.subr.mxu0 0.0
    %85 = vmatpush1.msra.mxu0 0.0
    %86 = vmatprep.subr.mxu0 0.0
    %87 = vmatpush1.msra.mxu0 0.0
    %88 = vmatprep.subr.mxu0 0.0
    %89 = vmatpush1.msra.mxu0 0.0
    %90 = vmatprep.subr.mxu0 0.0
    %91 = vmatpush1.msra.mxu0 0.0
    %92 = vmatprep.subr.mxu0 0.0
    %93 = vmatpush1.msra.mxu0 0.0
    %94 = vmatprep.subr.mxu0 0.0
    %95 = vmatpush1.msra.mxu0 0.0
    %96 = vmatprep.subr.mxu0 0.0
    %97 = vmatpush1.msra.mxu0 0.0
    %98 = vmatprep.mubr.f32.mxu0 0.0
    %99 = vmatmul.mubr.f32.gmra.mrb[0].mxu0 %v28
    %v100 = vpop.f32.mrb[0].mxu0
    %v101 = vadd.f32 %v24, %v100
    %v102 = vpop.f32.mrb[0].mxu0
    %103 = vdwg.mxu0
    %vm104 = vcmask 80896
    %v105 = vsel %vm104, %v101, -inf
    %106 = vmax.xlane.f32.xlu0 %v105
    %v107 = vpop.xlane.xlu0 %106
    %v108 = vsub.f32 %v101, %v107
    %v109 = vmul.f32 %v108, 1.442695
    %v110 = vpow.pop %v109
    %v111 = vsel %vm104, %v110, 0.0
    %112 = vadd.xlane.f32.xlu0 %v111
    %v113 = vpop.xlane.xlu0 %112
    %v114 = vlog2.pop %v113
    %v115 = vmul.f32 %v114, 0.6931472
    %v116 = vsub.f32 %v108, %v115
    %117 = vst.msk [vmem:[#allocation2] sm:$0xff] %vm104, %v116
    // Predicated region
    $region14: #{tpu_custom_call.1} parent=1 // pred_check
      _
    $region15: #{tpu_custom_call.1} parent=1 // pred_check_branch
      %119 = sbr.rel (0) target = $region17
    $region16: #{tpu_custom_call.1} parent=1 // pred_region
      %s121 = ssub.s32 128, 128
      %122 = vsyncadd [#allocation3], %s121
      %s124 = sshll.u32 [#allocation2], 4
      %s125 = int_to_ptr.vmem [resolvable:$true] %s124
      %127 = dma.vmem_to_hbm [thread:$0]  %s125, 128, %s3, [#allocation3]
    $region17: #{tpu_custom_call.1} parent=1 // pred_fallthru
      _
    // Predicated region
    $region18: #{tpu_custom_call.1} parent=1 // pred_check
      _
    $region19: #{tpu_custom_call.1} parent=1 // pred_check_branch
      %129 = sbr.rel (0) target = $region21
    $region20: #{tpu_custom_call.1} parent=1 // pred_region
      %130 = dma.done [#allocation3], 128
    $region21: #{tpu_custom_call.1} parent=1 // pred_fallthru
      _
    %131 = vsyncpa [#allocation3], 1

</llo_original>
